<compile_context>
chip_gen: v5e
topology: v5e:2x2
jax: 0.10.0
libtpu: 0.0.40
codegen_flags: <defaults>
</compile_context>

<pallas_src>
import jax
import jax.numpy as jnp
from jax.experimental import pallas as pl
from jax.experimental.pallas import tpu as pltpu


def _copy_kernel(x_ref, o_ref):
    # Straight copy of the current block.
    o_ref[...] = x_ref[...]


def _largest_divisor_leq(m, cap):
    cap = max(1, min(m, cap))
    for d in range(cap, 0, -1):
        if m % d == 0:
            return d
    return 1


def _prod(xs):
    p = 1
    for d in xs:
        p *= d
    return p


def _copy_call(arr, block_shape, grid, index_map):
    return pl.pallas_call(
        _copy_kernel,
        out_shape=jax.ShapeDtypeStruct(arr.shape, arr.dtype),
        grid=grid,
        in_specs=[pl.BlockSpec(block_shape, index_map)],
        out_specs=pl.BlockSpec(block_shape, index_map),
        input_output_aliases={0: 0},  # donate the (temporary) slab buffer
        compiler_params=pltpu.CompilerParams(
            dimension_semantics=("parallel",),
            vmem_limit_bytes=32 << 20,
        ),
    )(arr)


def pallas_view(x, output_shape):
    """Equivalent of torch: x.view(x.shape[0], *output_shape)."""
    b = x.shape[0]
    f = _prod(x.shape[1:])
    assert _prod(output_shape) == f, "output_shape incompatible with input size"

    n = b * f
    itemsize = jnp.dtype(x.dtype).itemsize
    lane = 128
    # Native sublane packing per vreg: f32 -> 8, bf16 -> 16, int8/fp8 -> 32.
    sublane = max(8, 32 // itemsize)
    tile_unit = sublane * lane
    # ~4 MiB blocks: in+out double-buffered ~= 16 MiB VMEM, safe everywhere.
    cap_units = max(1, ((4 << 20) // itemsize) // tile_unit)

    if n % tile_unit == 0:
        # --- Aligned path: lane-dense slab, full (8,128) vregs, no padding. ---
        rows = n // lane                                  # multiple of sublane
        slab = x.reshape(rows, lane)
        block_rows = sublane * _largest_divisor_leq(rows // sublane, cap_units)
        out_slab = _copy_call(
            slab, (block_rows, lane), (rows // block_rows,), lambda i: (i, 0)
        )
        return out_slab.reshape(b, *output_shape)

    if n * itemsize <= (8 << 20):
        # --- Small irregular input: single full-array block, no pad/slice. ---
        flat = x.reshape(b, f)
        out = _copy_call(flat, (b, f), (1,), lambda i: (0, 0))
        return out.reshape(b, *output_shape)

    # --- Large irregular input: pad tail to a full tile, slab copy, slice. ---
    n_pad = ((n + tile_unit - 1) // tile_unit) * tile_unit
    flat = jnp.pad(x.reshape(-1), (0, n_pad - n))
    rows = n_pad // lane
    slab = flat.reshape(rows, lane)
    block_rows = sublane * _largest_divisor_leq(rows // sublane, cap_units)
    out_slab = _copy_call(
        slab, (block_rows, lane), (rows // block_rows,), lambda i: (i, 0)
    )
    return out_slab.reshape(-1)[:n].reshape(b, *output_shape)


if __name__ == "__main__":
    key = jax.random.PRNGKey(0)

    # Small NCHW input, as a DCGAN intermediate would be.
    x = jax.random.normal(key, (2, 4, 16, 16), dtype=jnp.float32)
    output_shape = (16, 8, 8)  # same per-row element count: 4*16*16 == 16*8*8

    y = pallas_view(x, output_shape)
    y = jax.block_until_ready(y)

    y_ref = x.reshape(x.shape[0], *output_shape)
    assert y.shape == (2, 16, 8, 8)
    assert y.dtype == x.dtype
    assert jnp.array_equal(y, y_ref)

    # Exercise the irregular (non-tile-aligned) path as well.
    x2 = jax.random.normal(key, (2, 3, 5, 7), dtype=jnp.float32)
    y2 = jax.block_until_ready(pallas_view(x2, (7, 15)))
    assert jnp.array_equal(y2, x2.reshape(2, 7, 15))

    print("KERNEL_OK")
</pallas_src>

<mosaic_0001>
module attributes {stable_mosaic.version = 11 : i64} {
  func.func @_copy_kernel(%arg0: i32, %arg1: memref<16x128xf32, #tpu.memory_space<vmem>>, %arg2: memref<16x128xf32, #tpu.memory_space<vmem>>) attributes {dimension_semantics = [#tpu.dimension_semantics<parallel>], iteration_bounds = array<i64: 1>, scalar_prefetch = 0 : i64, scratch_operands = 0 : i64, tpu.core_type = #tpu.core_type<tc>, window_params = [{transform_indices = @transform_0, window_bounds = array<i64: 16, 128>}, {transform_indices = @transform_1, window_bounds = array<i64: 16, 128>}]} {
    %c0 = arith.constant 0 : index
    %c0_0 = arith.constant 0 : index
    %0 = vector.load %arg1[%c0, %c0_0] : memref<16x128xf32, #tpu.memory_space<vmem>>, vector<16x128xf32>
    %c0_1 = arith.constant 0 : index
    %c0_2 = arith.constant 0 : index
    %1 = vector.load %arg2[%c0_1, %c0_2] : memref<16x128xf32, #tpu.memory_space<vmem>>, vector<16x128xf32>
    tpu.vector_store %arg2[%c0_1, %c0_2], %0 {strides = array<i32>} : memref<16x128xf32, #tpu.memory_space<vmem>>, vector<16x128xf32>,
    return
  }
  func.func @transform_0(%arg0: i32) -> (i32, i32) {
    %c0_i32 = arith.constant 0 : i32
    %c0_i32_0 = arith.constant 0 : i32
    return %arg0, %c0_i32 : i32, i32
  }
  func.func @transform_1(%arg0: i32) -> (i32, i32) {
    %c0_i32 = arith.constant 0 : i32
    %c0_i32_0 = arith.constant 0 : i32
    return %arg0, %c0_i32 : i32, i32
  }
}

</mosaic_0001>

<llo_original>
// kernel: tpu_custom_call.1
$region0: #{tpu_custom_call.1}
  #allocation0 [shape = 'u32[]', space=smem, size = 0x4, offset = 0x4, fixed_abs, tag = 'smem constant byte address 0x4 - core index']
  #allocation1 [shape = 'u32[72,128]{1,0:T(1,128)}', space=vmem, size = 0x9000, scoped, tag = 'internal scratch']
  %s0 = inlined_call_operand.hbm [shape: f32[16,128], index: 0, kind: input, shape index: {}, may-alias: {0,1}]
  %s1 = inlined_call_operand.hbm [shape: f32[16,128], index: 1, kind: output, shape index: {}, may-alias: {0,1}]
  %s2 = sld [smem:[#allocation0]]
  $region18: #{tpu_custom_call.1} parent=0
    _
  %s4 = ssub.s32 1, %s2
  %s5 = scalar_select 0, %s4, %s2
  $region1: #{tpu_custom_call.1} parent=0
    #allocation2 [shape = 'u8[8192]{0}', space=vmem, size = 0x2000, scoped, tag = 'input window, operand 0, single buffered']
    #allocation3 [shape = 's32[1]{0}', space=sflag, size = 0x4, scoped, tag = 'scoped memory for tpu_custom_call.1']
    #allocation4 [shape = 's32[1]{0}', space=sflag, size = 0x4, scoped, tag = 'scoped memory for tpu_custom_call.1']
    #allocation5 [shape = 'u8[8192]{0}', space=vmem, size = 0x2000, scoped, tag = 'output window, operand 0, single buffered']
    %6 = vsyncpa [#allocation3], 0
    %7 = vsyncpa [#allocation4], 0
    // Predicated region
    $region2: #{tpu_custom_call.1} parent=1 // pred_check
      _
    $region3: #{tpu_custom_call.1} parent=1 // pred_check_branch
      %9 = sbr.rel (0) target = $region5
    $region4: #{tpu_custom_call.1} parent=1 // pred_region
      %11 = vsyncadd [#allocation3], 0
      %s12 = sshll.u32 %s0, 4
      %s13 = int_to_ptr.hbm [resolvable:$true] %s12
      %s14 = sshll.u32 [#allocation2], 4
      %s15 = int_to_ptr.vmem [resolvable:$true] %s14
      %20 = dma.hbm_to_vmem [thread:$0]  %s13, 256, %s15, [#allocation3], 128, 128, 8
    $region5: #{tpu_custom_call.1} parent=1 // pred_fallthru
      _
    // Predicated region
    $region6: #{tpu_custom_call.1} parent=1 // pred_check
      _
    $region7: #{tpu_custom_call.1} parent=1 // pred_check_branch
      %22 = sbr.rel (0) target = $region9
    $region8: #{tpu_custom_call.1} parent=1 // pred_region
      %24 = dma.done [#allocation3], 256
    $region9: #{tpu_custom_call.1} parent=1 // pred_fallthru
      _
    %v25 = vld [vmem:[#allocation2] sm:$0xff]
    %v26 = vld [vmem:[#allocation2 + $0x8] sm:$0xff]
    %27 = vst [vmem:[#allocation5] sm:$0xff] %v25
    %28 = vst [vmem:[#allocation5 + $0x8] sm:$0xff] %v26
    // Predicated region
    $region10: #{tpu_custom_call.1} parent=1 // pred_check
      _
    $region11: #{tpu_custom_call.1} parent=1 // pred_check_branch
      %30 = sbr.rel (0) target = $region13
    $region12: #{tpu_custom_call.1} parent=1 // pred_region
      %32 = vsyncadd [#allocation4], 0
      %s33 = sshll.u32 [#allocation5], 4
      %s34 = int_to_ptr.vmem [resolvable:$true] %s33
      %s35 = sshll.u32 %s1, 4
      %s36 = int_to_ptr.hbm [resolvable:$true] %s35
      %41 = dma.vmem_to_hbm [thread:$0]  %s34, 256, %s36, [#allocation4], 128, 128, 8
    $region13: #{tpu_custom_call.1} parent=1 // pred_fallthru
      _
    // Predicated region
    $region14: #{tpu_custom_call.1} parent=1 // pred_check
      _
    $region15: #{tpu_custom_call.1} parent=1 // pred_check_branch
      %43 = sbr.rel (0) target = $region17
    $region16: #{tpu_custom_call.1} parent=1 // pred_region
      %45 = dma.done [#allocation4], 256
    $region17: #{tpu_custom_call.1} parent=1 // pred_fallthru
      _
    %46 = vsyncpa [#allocation3], 1
    %47 = vsyncpa [#allocation4], 1

</llo_original>
